<compile_context>
chip_gen: v6e
topology: v6e:2x2x1
jax: 0.10.0
libtpu: 0.0.40
codegen_flags: <defaults>
</compile_context>

<pallas_src>
import functools

import jax
import jax.numpy as jnp
from jax.experimental import pallas as pl
from jax.experimental.pallas import tpu as pltpu


def _decoder_kernel(x_ref, w_in_ref, b_in_ref, w_res_ref, bn_scale_ref, bn_shift_ref,
                    w_out_ref, b_out_ref, o_ref, *, n_layers, kernel_size,
                    reduction_factor):
    """One batch-tile per grid step; activations kept in (row, channel) layout with rows =
    batch-tile elements stacked along time.

    x_ref       : (Bt, T, C_cond)             f32   raw encoder output (pre-upsample)
    w_in_ref    : (C_cond, C_inner)           bf16  interp_layer weight (transposed)
    b_in_ref    : (1, C_inner)                f32
    w_res_ref   : (L, 2, K*C_inner, C_inner)  bf16  im2col-flattened res-conv weights
    bn_scale_ref: (L, 2, 1, C_inner)          f32   gamma / sqrt(var + eps)
    bn_shift_ref: (L, 2, 1, C_inner)          f32   beta - mean * scale
    w_out_ref   : (C_inner, C_out)            bf16  out_layer weight (transposed)
    b_out_ref   : (1, C_out)                  f32
    o_ref       : (Bt, T*r, C_out)            f32   (NCW transpose happens in the wrapper)
    """
    K = kernel_size
    pad = (K - 1) // 2
    r = reduction_factor
    Bt, T, C_cond = x_ref.shape
    T_up = T * r
    M = Bt * T_up
    C_inner = w_in_ref.shape[1]
    C_out = w_out_ref.shape[1]

    # ---- interp_layer (1x1 conv). Pointwise in time => commutes with nearest upsample,
    # so run it on the pre-upsample signal (r x fewer MACs, r x less input traffic).
    # Batch-tile rows are stacked along the matmul M dimension.
    x = x_ref[...].reshape(Bt * T, C_cond).astype(jnp.bfloat16)
    h = jnp.dot(x, w_in_ref[...],
                preferred_element_type=jnp.float32) + b_in_ref[...]      # (Bt*T, C_inner) f32

    # ---- nearest-neighbour upsample along time, entirely in VMEM:
    # (Bt*T, 1, C) -> (Bt*T, r, C) -> (Bt*T_up, C); per-element time stays contiguous.
    if r > 1:
        h = jnp.broadcast_to(h[:, None, :], (Bt * T, r, C_inner)).reshape(M, C_inner)

    def tap(hb, d):
        """Time-shift by d steps within each batch element, zero-filled at the element
        edges (matches Conv1d 'same' zero padding). hb is already bf16."""
        if d == 0:
            return hb
        h3 = hb.reshape(Bt, T_up, C_inner)
        zero = jnp.zeros((Bt, abs(d), C_inner), dtype=hb.dtype)
        if d > 0:
            h3 = jnp.concatenate([h3[:, d:, :], zero], axis=1)
        else:
            h3 = jnp.concatenate([zero, h3[:, :T_up + d, :]], axis=1)
        return h3.reshape(M, C_inner)
    # TODO(synk): tap slices start at sublane offsets 1..K-1 -> Mosaic relayout copies;
    # switch to pltpu.roll-based shifts (idle XLU slot) once bf16 sublane rotate is verified.

    # Small channel count -> one deep-contraction im2col matmul (fills the MXU, right shape
    # for v5e). Wide channels (>= 256, v6e/v7x) -> K accumulating matmuls: no K-x im2col
    # buffer, and the tap accumulation is free in v7x's MRB.
    use_im2col = C_inner < 256

    # TODO(synk): switch this Python layer loop to lax.fori_loop if n_layers grows past ~4.
    for l in range(n_layers):
        res = h
        for c in range(2):
            hb = h.astype(jnp.bfloat16)                  # cast ONCE, before building taps
            taps = [tap(hb, j - pad) for j in range(K)]
            if use_im2col:
                im2col = jnp.concatenate(taps, axis=1)   # (M, K*C_inner) bf16
                acc = jnp.dot(im2col, w_res_ref[l, c],
                              preferred_element_type=jnp.float32)        # (M, C_inner) f32
            else:
                acc = jnp.dot(taps[0], w_res_ref[l, c, :C_inner, :],
                              preferred_element_type=jnp.float32)
                for j in range(1, K):
                    acc = acc + jnp.dot(
                        taps[j], w_res_ref[l, c, j * C_inner:(j + 1) * C_inner, :],
                        preferred_element_type=jnp.float32)
            # Folded BatchNorm (running stats) + ReLU. Dropout == identity in eval mode.
            h = jnp.maximum(acc * bn_scale_ref[l, c] + bn_shift_ref[l, c], 0.0)
        h = h + res                                                      # residual

    # ---- out_layer (1x1 conv). Emit (Bt, T_up, C_out); XLA does the NCW transpose outside.
    out = jnp.dot(h.astype(jnp.bfloat16), w_out_ref[...],
                  preferred_element_type=jnp.float32) + b_out_ref[...]   # (M, C_out)
    o_ref[...] = out.reshape(Bt, T_up, C_out).astype(o_ref.dtype)


def _pick_batch_tile(B, T_up, target_rows=1024):
    """Pack batch elements into one grid step until the matmul M dim reaches ~target_rows."""
    bt = max(1, min(B, max(1, target_rows // max(T_up, 1))))
    while B % bt:
        bt -= 1
    return bt


def res_tc_decoder(enc_output, params, *, n_layers, kernel_size, reduction_factor,
                   batch_tile=None):
    """enc_output: (B, T, C_cond) f32 -> (B, C_out, T * reduction_factor) f32."""
    # 'same' padding of the ResBlock convs requires an odd kernel size (as in the PyTorch module).
    assert kernel_size % 2 == 1, "ResTCDecoder kernel assumes odd kernel_size"
    (w_in, b_in, w_res, bn_scale, bn_shift, w_out, b_out) = params

    B, T, C_cond = enc_output.shape
    C_inner = w_in.shape[0]
    C_out = w_out.shape[0]
    K = kernel_size
    T_up = T * reduction_factor
    Bt = batch_tile if batch_tile is not None else _pick_batch_tile(B, T_up)
    assert B % Bt == 0

    # One-time weight prep (outside the kernel): transpose for the (time, channel) layout,
    # flatten res-conv weights for the im2col / per-tap matmuls, cast matmul operands to bf16.
    w_in_t = jnp.transpose(w_in).astype(jnp.bfloat16)                    # (C_cond, C_inner)
    b_in_r = b_in.reshape(1, C_inner).astype(jnp.float32)
    # PyTorch Conv1d weight (out, in, tap) -> rows ordered (tap, in) -> (L, 2, K*C_in, C_out)
    w_res_f = jnp.transpose(w_res, (0, 1, 4, 3, 2)).reshape(
        n_layers, 2, K * C_inner, C_inner).astype(jnp.bfloat16)
    bn_scale_r = bn_scale.reshape(n_layers, 2, 1, C_inner).astype(jnp.float32)
    bn_shift_r = bn_shift.reshape(n_layers, 2, 1, C_inner).astype(jnp.float32)
    w_out_t = jnp.transpose(w_out).astype(jnp.bfloat16)                  # (C_inner, C_out)
    b_out_r = b_out.reshape(1, C_out).astype(jnp.float32)

    kernel = functools.partial(_decoder_kernel, n_layers=n_layers,
                               kernel_size=kernel_size,
                               reduction_factor=reduction_factor)

    # Grid-invariant weights / BN params: constant index map across the batch grid, so
    # single-buffer them (double-buffering would only double their VMEM footprint).
    def weight_spec(shape):
        return pl.BlockSpec(shape, lambda b: (0,) * len(shape),
                            pipeline_mode=pl.Buffered(1))

    out_ntc = pl.pallas_call(
        kernel,
        out_shape=jax.ShapeDtypeStruct((B, T_up, C_out), jnp.float32),
        grid_spec=pltpu.PrefetchScalarGridSpec(
            num_scalar_prefetch=0,
            grid=(B // Bt,),
            in_specs=[
                pl.BlockSpec((Bt, T, C_cond), lambda b: (b, 0, 0)),
                weight_spec((C_cond, C_inner)),
                weight_spec((1, C_inner)),
                weight_spec((n_layers, 2, K * C_inner, C_inner)),
                weight_spec((n_layers, 2, 1, C_inner)),
                weight_spec((n_layers, 2, 1, C_inner)),
                weight_spec((C_inner, C_out)),
                weight_spec((1, C_out)),
            ],
            out_specs=pl.BlockSpec((Bt, T_up, C_out), lambda b: (b, 0, 0)),
        ),
        compiler_params=pltpu.CompilerParams(
            dimension_semantics=("parallel",),
            # Above the 32 MiB scoped default (bigger activation tiles on v6e), while
            # keeping headroom inside v7x's 64 MiB physical VMEM.
            vmem_limit_bytes=48 * 1024 * 1024,
        ),
    )(enc_output, w_in_t, b_in_r, w_res_f, bn_scale_r, bn_shift_r, w_out_t, b_out_r)

    # Module output layout is NCW: (B, C_out, T_up). Plain XLA transpose (not in-kernel).
    return jnp.transpose(out_ntc, (0, 2, 1))


def reference(enc_output, params, *, n_layers, kernel_size, reduction_factor):
    """Pure-JAX f32 reference mirroring the PyTorch forward (eval mode)."""
    (w_in, b_in, w_res, bn_scale, bn_shift, w_out, b_out) = params
    x = jnp.transpose(enc_output, (0, 2, 1))                  # (B, C, T)
    x = jnp.repeat(x, reduction_factor, axis=-1)              # nearest interpolation
    T = x.shape[-1]
    pad = (kernel_size - 1) // 2

    h = jnp.einsum('oc,bct->bot', w_in, x) + b_in[None, :, None]
    for l in range(n_layers):
        res = h
        for c in range(2):
            hp = jnp.pad(h, ((0, 0), (0, 0), (pad, pad)))
            acc = jnp.zeros_like(h)
            for j in range(kernel_size):
                acc = acc + jnp.einsum('oi,bit->bot', w_res[l, c, :, :, j], hp[:, :, j:j + T])
            h = jnp.maximum(acc * bn_scale[l, c][None, :, None]
                            + bn_shift[l, c][None, :, None], 0.0)
        h = h + res
    return jnp.einsum('oc,bct->bot', w_out, h) + b_out[None, :, None]


def init_params(key, *, cond_channels, out_channels, inner_channels, n_layers, kernel_size):
    ks = jax.random.split(key, 8)
    eps = 1e-5
    w_in = 0.1 * jax.random.normal(ks[0], (inner_channels, cond_channels), jnp.float32)
    b_in = 0.1 * jax.random.normal(ks[1], (inner_channels,), jnp.float32)
    # PyTorch Conv1d weight layout per res conv: (C_out, C_in, K)
    w_res = 0.1 * jax.random.normal(
        ks[2], (n_layers, 2, inner_channels, inner_channels, kernel_size), jnp.float32)
    # BatchNorm1d (inference) folded into per-channel scale/shift
    gamma = 1.0 + 0.1 * jax.random.normal(ks[3], (n_layers, 2, inner_channels), jnp.float32)
    beta = 0.1 * jax.random.normal(ks[4], (n_layers, 2, inner_channels), jnp.float32)
    r_mean = 0.1 * jax.random.normal(ks[5], (n_layers, 2, inner_channels), jnp.float32)
    r_var = 1.0 + 0.5 * jax.random.uniform(ks[6], (n_layers, 2, inner_channels), jnp.float32)
    bn_scale = gamma / jnp.sqrt(r_var + eps)
    bn_shift = beta - r_mean * bn_scale
    w_out = 0.1 * jax.random.normal(ks[7], (out_channels, inner_channels), jnp.float32)
    b_out = 0.05 * jnp.ones((out_channels,), jnp.float32)
    return (w_in, b_in, w_res, bn_scale, bn_shift, w_out, b_out)


if __name__ == "__main__":
    B, T, cond_channels = 2, 8, 32
    inner_channels, out_channels = 32, 16
    n_layers, kernel_size, reduction_factor = 2, 3, 2
    # dropout rate is irrelevant in eval mode (identity)

    key = jax.random.PRNGKey(0)
    k_x, k_p = jax.random.split(key)
    enc_output = jax.random.normal(k_x, (B, T, cond_channels), jnp.float32)
    params = init_params(k_p, cond_channels=cond_channels, out_channels=out_channels,
                         inner_channels=inner_channels, n_layers=n_layers,
                         kernel_size=kernel_size)

    out = res_tc_decoder(enc_output, params, n_layers=n_layers,
                         kernel_size=kernel_size, reduction_factor=reduction_factor)
    out = jax.block_until_ready(out)

    ref = reference(enc_output, params, n_layers=n_layers,
                    kernel_size=kernel_size, reduction_factor=reduction_factor)
    assert out.shape == (B, out_channels, T * reduction_factor), out.shape
    # bf16 MXU operands (f32 accumulation) vs. a pure-f32 reference -> relaxed tolerance.
    max_err = float(jnp.max(jnp.abs(out - ref)))
    assert jnp.allclose(out, ref, atol=5e-2, rtol=5e-2), max_err
    print("KERNEL_OK")
</pallas_src>

<mosaic_0001>
module attributes {stable_mosaic.version = 11 : i64} {
  func.func @_decoder_kernel(%arg0: i32, %arg1: memref<2x8x32xf32, #tpu.memory_space<vmem>>, %arg2: memref<32x32xbf16, #tpu.memory_space<vmem>>, %arg3: memref<1x32xf32, #tpu.memory_space<vmem>>, %arg4: memref<2x2x96x32xbf16, #tpu.memory_space<vmem>>, %arg5: memref<2x2x1x32xf32, #tpu.memory_space<vmem>>, %arg6: memref<2x2x1x32xf32, #tpu.memory_space<vmem>>, %arg7: memref<32x16xbf16, #tpu.memory_space<vmem>>, %arg8: memref<1x16xf32, #tpu.memory_space<vmem>>, %arg9: memref<2x16x16xf32, #tpu.memory_space<vmem>>) attributes {dimension_semantics = [#tpu.dimension_semantics<parallel>], iteration_bounds = array<i64: 1>, scalar_prefetch = 0 : i64, scratch_operands = 0 : i64, tpu.core_type = #tpu.core_type<tc>, window_params = [{transform_indices = @transform_0, window_bounds = array<i64: 2, 8, 32>}, {pipeline_mode = #tpu.pipeline_mode<synchronous>, transform_indices = @transform_1, window_bounds = array<i64: 32, 32>}, {pipeline_mode = #tpu.pipeline_mode<synchronous>, transform_indices = @transform_2, window_bounds = array<i64: 1, 32>}, {pipeline_mode = #tpu.pipeline_mode<synchronous>, transform_indices = @transform_3, window_bounds = array<i64: 2, 2, 96, 32>}, {pipeline_mode = #tpu.pipeline_mode<synchronous>, transform_indices = @transform_4, window_bounds = array<i64: 2, 2, 1, 32>}, {pipeline_mode = #tpu.pipeline_mode<synchronous>, transform_indices = @transform_5, window_bounds = array<i64: 2, 2, 1, 32>}, {pipeline_mode = #tpu.pipeline_mode<synchronous>, transform_indices = @transform_6, window_bounds = array<i64: 32, 16>}, {pipeline_mode = #tpu.pipeline_mode<synchronous>, transform_indices = @transform_7, window_bounds = array<i64: 1, 16>}, {transform_indices = @transform_8, window_bounds = array<i64: 2, 16, 16>}]} {
    %c0 = arith.constant 0 : index
    %c0_0 = arith.constant 0 : index
    %c0_1 = arith.constant 0 : index
    %0 = vector.load %arg1[%c0, %c0_0, %c0_1] : memref<2x8x32xf32, #tpu.memory_space<vmem>>, vector<2x8x32xf32>
    %1 = vector.shape_cast %0 : vector<2x8x32xf32> to vector<16x32xf32>
    %2 = arith.truncf %1 : vector<16x32xf32> to vector<16x32xbf16>
    %c0_2 = arith.constant 0 : index
    %c0_3 = arith.constant 0 : index
    %3 = vector.load %arg2[%c0_2, %c0_3] : memref<32x32xbf16, #tpu.memory_space<vmem>>, vector<32x32xbf16>
    %cst = arith.constant dense<0.000000e+00> : vector<16x32xf32>
    %4 = tpu.matmul %2, %3, %cst {dimension_numbers = #tpu.dot_dimension_numbers<[1], [0], [0], [1], [0, 0, 1, 1], [], []>} : vector<16x32xbf16>, vector<32x32xbf16>, vector<16x32xf32> -> vector<16x32xf32>
    %c0_4 = arith.constant 0 : index
    %c0_5 = arith.constant 0 : index
    %5 = vector.load %arg3[%c0_4, %c0_5] : memref<1x32xf32, #tpu.memory_space<vmem>>, vector<1x32xf32>
    %6 = vector.broadcast %5 : vector<1x32xf32> to vector<16x32xf32>
    %7 = arith.addf %4, %6 : vector<16x32xf32>
    %8 = vector.shape_cast %7 : vector<16x32xf32> to vector<16x1x32xf32>
    %9 = vector.shape_cast %8 : vector<16x1x32xf32> to vector<16x1x32xf32>
    %10 = vector.broadcast %9 : vector<16x1x32xf32> to vector<16x2x32xf32>
    %11 = vector.shape_cast %10 : vector<16x2x32xf32> to vector<32x32xf32>
    %12 = arith.truncf %11 : vector<32x32xf32> to vector<32x32xbf16>
    %13 = vector.shape_cast %12 : vector<32x32xbf16> to vector<2x16x32xbf16>
    %cst_6 = arith.constant 0.000000e+00 : bf16
    %14 = vector.broadcast %cst_6 : bf16 to vector<2x1x32xbf16>
    %15 = vector.extract_strided_slice %13 {offsets = [0, 0, 0], sizes = [2, 15, 32], strides = [1, 1, 1]} : vector<2x16x32xbf16> to vector<2x15x32xbf16>
    %16 = tpu.concatenate %14, %15 in 1 : vector<2x1x32xbf16>, vector<2x15x32xbf16> -> vector<2x16x32xbf16>
    %17 = vector.shape_cast %16 : vector<2x16x32xbf16> to vector<32x32xbf16>
    %18 = vector.shape_cast %12 : vector<32x32xbf16> to vector<2x16x32xbf16>
    %cst_7 = arith.constant 0.000000e+00 : bf16
    %19 = vector.broadcast %cst_7 : bf16 to vector<2x1x32xbf16>
    %20 = vector.extract_strided_slice %18 {offsets = [0, 1, 0], sizes = [2, 15, 32], strides = [1, 1, 1]} : vector<2x16x32xbf16> to vector<2x15x32xbf16>
    %21 = tpu.concatenate %20, %19 in 1 : vector<2x15x32xbf16>, vector<2x1x32xbf16> -> vector<2x16x32xbf16>
    %22 = vector.shape_cast %21 : vector<2x16x32xbf16> to vector<32x32xbf16>
    %23 = tpu.concatenate %17, %12, %22 in 1 : vector<32x32xbf16>, vector<32x32xbf16>, vector<32x32xbf16> -> vector<32x96xbf16>
    %c0_8 = arith.constant 0 : index
    %c0_9 = arith.constant 0 : index
    %c0_10 = arith.constant 0 : index
    %c0_11 = arith.constant 0 : index
    %24 = vector.load %arg4[%c0_8, %c0_9, %c0_10, %c0_11] : memref<2x2x96x32xbf16, #tpu.memory_space<vmem>>, vector<1x1x96x32xbf16>
    %25 = vector.shape_cast %24 : vector<1x1x96x32xbf16> to vector<96x32xbf16>
    %cst_12 = arith.constant dense<0.000000e+00> : vector<32x32xf32>
    %26 = tpu.matmul %23, %25, %cst_12 {dimension_numbers = #tpu.dot_dimension_numbers<[1], [0], [0], [1], [0, 0, 1, 1], [], []>} : vector<32x96xbf16>, vector<96x32xbf16>, vector<32x32xf32> -> vector<32x32xf32>
    %c0_13 = arith.constant 0 : index
    %c0_14 = arith.constant 0 : index
    %c0_15 = arith.constant 0 : index
    %c0_16 = arith.constant 0 : index
    %27 = vector.load %arg5[%c0_13, %c0_14, %c0_15, %c0_16] : memref<2x2x1x32xf32, #tpu.memory_space<vmem>>, vector<1x1x1x32xf32>
    %28 = vector.shape_cast %27 : vector<1x1x1x32xf32> to vector<1x32xf32>
    %29 = vector.broadcast %28 : vector<1x32xf32> to vector<32x32xf32>
    %30 = arith.mulf %26, %29 : vector<32x32xf32>
    %c0_17 = arith.constant 0 : index
    %c0_18 = arith.constant 0 : index
    %c0_19 = arith.constant 0 : index
    %c0_20 = arith.constant 0 : index
    %31 = vector.load %arg6[%c0_17, %c0_18, %c0_19, %c0_20] : memref<2x2x1x32xf32, #tpu.memory_space<vmem>>, vector<1x1x1x32xf32>
    %32 = vector.shape_cast %31 : vector<1x1x1x32xf32> to vector<1x32xf32>
    %33 = vector.broadcast %32 : vector<1x32xf32> to vector<32x32xf32>
    %34 = arith.addf %30, %33 : vector<32x32xf32>
    %cst_21 = arith.constant 0.000000e+00 : f32
    %35 = vector.broadcast %cst_21 : f32 to vector<32x32xf32>
    %36 = arith.maximumf %34, %35 : vector<32x32xf32>
    %37 = arith.truncf %36 : vector<32x32xf32> to vector<32x32xbf16>
    %38 = vector.shape_cast %37 : vector<32x32xbf16> to vector<2x16x32xbf16>
    %cst_22 = arith.constant 0.000000e+00 : bf16
    %39 = vector.broadcast %cst_22 : bf16 to vector<2x1x32xbf16>
    %40 = vector.extract_strided_slice %38 {offsets = [0, 0, 0], sizes = [2, 15, 32], strides = [1, 1, 1]} : vector<2x16x32xbf16> to vector<2x15x32xbf16>
    %41 = tpu.concatenate %39, %40 in 1 : vector<2x1x32xbf16>, vector<2x15x32xbf16> -> vector<2x16x32xbf16>
    %42 = vector.shape_cast %41 : vector<2x16x32xbf16> to vector<32x32xbf16>
    %43 = vector.shape_cast %37 : vector<32x32xbf16> to vector<2x16x32xbf16>
    %cst_23 = arith.constant 0.000000e+00 : bf16
    %44 = vector.broadcast %cst_23 : bf16 to vector<2x1x32xbf16>
    %45 = vector.extract_strided_slice %43 {offsets = [0, 1, 0], sizes = [2, 15, 32], strides = [1, 1, 1]} : vector<2x16x32xbf16> to vector<2x15x32xbf16>
    %46 = tpu.concatenate %45, %44 in 1 : vector<2x15x32xbf16>, vector<2x1x32xbf16> -> vector<2x16x32xbf16>
    %47 = vector.shape_cast %46 : vector<2x16x32xbf16> to vector<32x32xbf16>
    %48 = tpu.concatenate %42, %37, %47 in 1 : vector<32x32xbf16>, vector<32x32xbf16>, vector<32x32xbf16> -> vector<32x96xbf16>
    %c0_24 = arith.constant 0 : index
    %c1 = arith.constant 1 : index
    %c0_25 = arith.constant 0 : index
    %c0_26 = arith.constant 0 : index
    %49 = vector.load %arg4[%c0_24, %c1, %c0_25, %c0_26] : memref<2x2x96x32xbf16, #tpu.memory_space<vmem>>, vector<1x1x96x32xbf16>
    %50 = vector.shape_cast %49 : vector<1x1x96x32xbf16> to vector<96x32xbf16>
    %cst_27 = arith.constant dense<0.000000e+00> : vector<32x32xf32>
    %51 = tpu.matmul %48, %50, %cst_27 {dimension_numbers = #tpu.dot_dimension_numbers<[1], [0], [0], [1], [0, 0, 1, 1], [], []>} : vector<32x96xbf16>, vector<96x32xbf16>, vector<32x32xf32> -> vector<32x32xf32>
    %c0_28 = arith.constant 0 : index
    %c1_29 = arith.constant 1 : index
    %c0_30 = arith.constant 0 : index
    %c0_31 = arith.constant 0 : index
    %52 = vector.load %arg5[%c0_28, %c1_29, %c0_30, %c0_31] : memref<2x2x1x32xf32, #tpu.memory_space<vmem>>, vector<1x1x1x32xf32>
    %53 = vector.shape_cast %52 : vector<1x1x1x32xf32> to vector<1x32xf32>
    %54 = vector.broadcast %53 : vector<1x32xf32> to vector<32x32xf32>
    %55 = arith.mulf %51, %54 : vector<32x32xf32>
    %c0_32 = arith.constant 0 : index
    %c1_33 = arith.constant 1 : index
    %c0_34 = arith.constant 0 : index
    %c0_35 = arith.constant 0 : index
    %56 = vector.load %arg6[%c0_32, %c1_33, %c0_34, %c0_35] : memref<2x2x1x32xf32, #tpu.memory_space<vmem>>, vector<1x1x1x32xf32>
    %57 = vector.shape_cast %56 : vector<1x1x1x32xf32> to vector<1x32xf32>
    %58 = vector.broadcast %57 : vector<1x32xf32> to vector<32x32xf32>
    %59 = arith.addf %55, %58 : vector<32x32xf32>
    %cst_36 = arith.constant 0.000000e+00 : f32
    %60 = vector.broadcast %cst_36 : f32 to vector<32x32xf32>
    %61 = arith.maximumf %59, %60 : vector<32x32xf32>
    %62 = arith.addf %61, %11 : vector<32x32xf32>
    %63 = arith.truncf %62 : vector<32x32xf32> to vector<32x32xbf16>
    %64 = vector.shape_cast %63 : vector<32x32xbf16> to vector<2x16x32xbf16>
    %cst_37 = arith.constant 0.000000e+00 : bf16
    %65 = vector.broadcast %cst_37 : bf16 to vector<2x1x32xbf16>
    %66 = vector.extract_strided_slice %64 {offsets = [0, 0, 0], sizes = [2, 15, 32], strides = [1, 1, 1]} : vector<2x16x32xbf16> to vector<2x15x32xbf16>
    %67 = tpu.concatenate %65, %66 in 1 : vector<2x1x32xbf16>, vector<2x15x32xbf16> -> vector<2x16x32xbf16>
    %68 = vector.shape_cast %67 : vector<2x16x32xbf16> to vector<32x32xbf16>
    %69 = vector.shape_cast %63 : vector<32x32xbf16> to vector<2x16x32xbf16>
    %cst_38 = arith.constant 0.000000e+00 : bf16
    %70 = vector.broadcast %cst_38 : bf16 to vector<2x1x32xbf16>
    %71 = vector.extract_strided_slice %69 {offsets = [0, 1, 0], sizes = [2, 15, 32], strides = [1, 1, 1]} : vector<2x16x32xbf16> to vector<2x15x32xbf16>
    %72 = tpu.concatenate %71, %70 in 1 : vector<2x15x32xbf16>, vector<2x1x32xbf16> -> vector<2x16x32xbf16>
    %73 = vector.shape_cast %72 : vector<2x16x32xbf16> to vector<32x32xbf16>
    %74 = tpu.concatenate %68, %63, %73 in 1 : vector<32x32xbf16>, vector<32x32xbf16>, vector<32x32xbf16> -> vector<32x96xbf16>
    %c1_39 = arith.constant 1 : index
    %c0_40 = arith.constant 0 : index
    %c0_41 = arith.constant 0 : index
    %c0_42 = arith.constant 0 : index
    %75 = vector.load %arg4[%c1_39, %c0_40, %c0_41, %c0_42] : memref<2x2x96x32xbf16, #tpu.memory_space<vmem>>, vector<1x1x96x32xbf16>
    %76 = vector.shape_cast %75 : vector<1x1x96x32xbf16> to vector<96x32xbf16>
    %cst_43 = arith.constant dense<0.000000e+00> : vector<32x32xf32>
    %77 = tpu.matmul %74, %76, %cst_43 {dimension_numbers = #tpu.dot_dimension_numbers<[1], [0], [0], [1], [0, 0, 1, 1], [], []>} : vector<32x96xbf16>, vector<96x32xbf16>, vector<32x32xf32> -> vector<32x32xf32>
    %c1_44 = arith.constant 1 : index
    %c0_45 = arith.constant 0 : index
    %c0_46 = arith.constant 0 : index
    %c0_47 = arith.constant 0 : index
    %78 = vector.load %arg5[%c1_44, %c0_45, %c0_46, %c0_47] : memref<2x2x1x32xf32, #tpu.memory_space<vmem>>, vector<1x1x1x32xf32>
    %79 = vector.shape_cast %78 : vector<1x1x1x32xf32> to vector<1x32xf32>
    %80 = vector.broadcast %79 : vector<1x32xf32> to vector<32x32xf32>
    %81 = arith.mulf %77, %80 : vector<32x32xf32>
    %c1_48 = arith.constant 1 : index
    %c0_49 = arith.constant 0 : index
    %c0_50 = arith.constant 0 : index
    %c0_51 = arith.constant 0 : index
    %82 = vector.load %arg6[%c1_48, %c0_49, %c0_50, %c0_51] : memref<2x2x1x32xf32, #tpu.memory_space<vmem>>, vector<1x1x1x32xf32>
    %83 = vector.shape_cast %82 : vector<1x1x1x32xf32> to vector<1x32xf32>
    %84 = vector.broadcast %83 : vector<1x32xf32> to vector<32x32xf32>
    %85 = arith.addf %81, %84 : vector<32x32xf32>
    %cst_52 = arith.constant 0.000000e+00 : f32
    %86 = vector.broadcast %cst_52 : f32 to vector<32x32xf32>
    %87 = arith.maximumf %85, %86 : vector<32x32xf32>
    %88 = arith.truncf %87 : vector<32x32xf32> to vector<32x32xbf16>
    %89 = vector.shape_cast %88 : vector<32x32xbf16> to vector<2x16x32xbf16>
    %cst_53 = arith.constant 0.000000e+00 : bf16
    %90 = vector.broadcast %cst_53 : bf16 to vector<2x1x32xbf16>
    %91 = vector.extract_strided_slice %89 {offsets = [0, 0, 0], sizes = [2, 15, 32], strides = [1, 1, 1]} : vector<2x16x32xbf16> to vector<2x15x32xbf16>
    %92 = tpu.concatenate %90, %91 in 1 : vector<2x1x32xbf16>, vector<2x15x32xbf16> -> vector<2x16x32xbf16>
    %93 = vector.shape_cast %92 : vector<2x16x32xbf16> to vector<32x32xbf16>
    %94 = vector.shape_cast %88 : vector<32x32xbf16> to vector<2x16x32xbf16>
    %cst_54 = arith.constant 0.000000e+00 : bf16
    %95 = vector.broadcast %cst_54 : bf16 to vector<2x1x32xbf16>
    %96 = vector.extract_strided_slice %94 {offsets = [0, 1, 0], sizes = [2, 15, 32], strides = [1, 1, 1]} : vector<2x16x32xbf16> to vector<2x15x32xbf16>
    %97 = tpu.concatenate %96, %95 in 1 : vector<2x15x32xbf16>, vector<2x1x32xbf16> -> vector<2x16x32xbf16>
    %98 = vector.shape_cast %97 : vector<2x16x32xbf16> to vector<32x32xbf16>
    %99 = tpu.concatenate %93, %88, %98 in 1 : vector<32x32xbf16>, vector<32x32xbf16>, vector<32x32xbf16> -> vector<32x96xbf16>
    %c1_55 = arith.constant 1 : index
    %c1_56 = arith.constant 1 : index
    %c0_57 = arith.constant 0 : index
    %c0_58 = arith.constant 0 : index
    %100 = vector.load %arg4[%c1_55, %c1_56, %c0_57, %c0_58] : memref<2x2x96x32xbf16, #tpu.memory_space<vmem>>, vector<1x1x96x32xbf16>
    %101 = vector.shape_cast %100 : vector<1x1x96x32xbf16> to vector<96x32xbf16>
    %cst_59 = arith.constant dense<0.000000e+00> : vector<32x32xf32>
    %102 = tpu.matmul %99, %101, %cst_59 {dimension_numbers = #tpu.dot_dimension_numbers<[1], [0], [0], [1], [0, 0, 1, 1], [], []>} : vector<32x96xbf16>, vector<96x32xbf16>, vector<32x32xf32> -> vector<32x32xf32>
    %c1_60 = arith.constant 1 : index
    %c1_61 = arith.constant 1 : index
    %c0_62 = arith.constant 0 : index
    %c0_63 = arith.constant 0 : index
    %103 = vector.load %arg5[%c1_60, %c1_61, %c0_62, %c0_63] : memref<2x2x1x32xf32, #tpu.memory_space<vmem>>, vector<1x1x1x32xf32>
    %104 = vector.shape_cast %103 : vector<1x1x1x32xf32> to vector<1x32xf32>
    %105 = vector.broadcast %104 : vector<1x32xf32> to vector<32x32xf32>
    %106 = arith.mulf %102, %105 : vector<32x32xf32>
    %c1_64 = arith.constant 1 : index
    %c1_65 = arith.constant 1 : index
    %c0_66 = arith.constant 0 : index
    %c0_67 = arith.constant 0 : index
    %107 = vector.load %arg6[%c1_64, %c1_65, %c0_66, %c0_67] : memref<2x2x1x32xf32, #tpu.memory_space<vmem>>, vector<1x1x1x32xf32>
    %108 = vector.shape_cast %107 : vector<1x1x1x32xf32> to vector<1x32xf32>
    %109 = vector.broadcast %108 : vector<1x32xf32> to vector<32x32xf32>
    %110 = arith.addf %106, %109 : vector<32x32xf32>
    %cst_68 = arith.constant 0.000000e+00 : f32
    %111 = vector.broadcast %cst_68 : f32 to vector<32x32xf32>
    %112 = arith.maximumf %110, %111 : vector<32x32xf32>
    %113 = arith.addf %112, %62 : vector<32x32xf32>
    %114 = arith.truncf %113 : vector<32x32xf32> to vector<32x32xbf16>
    %c0_69 = arith.constant 0 : index
    %c0_70 = arith.constant 0 : index
    %115 = vector.load %arg7[%c0_69, %c0_70] : memref<32x16xbf16, #tpu.memory_space<vmem>>, vector<32x16xbf16>
    %cst_71 = arith.constant dense<0.000000e+00> : vector<32x16xf32>
    %116 = tpu.matmul %114, %115, %cst_71 {dimension_numbers = #tpu.dot_dimension_numbers<[1], [0], [0], [1], [0, 0, 1, 1], [], []>} : vector<32x32xbf16>, vector<32x16xbf16>, vector<32x16xf32> -> vector<32x16xf32>
    %c0_72 = arith.constant 0 : index
    %c0_73 = arith.constant 0 : index
    %117 = vector.load %arg8[%c0_72, %c0_73] : memref<1x16xf32, #tpu.memory_space<vmem>>, vector<1x16xf32>
    %118 = vector.broadcast %117 : vector<1x16xf32> to vector<32x16xf32>
    %119 = arith.addf %116, %118 : vector<32x16xf32>
    %120 = vector.shape_cast %119 : vector<32x16xf32> to vector<2x16x16xf32>
    %c0_74 = arith.constant 0 : index
    %c0_75 = arith.constant 0 : index
    %c0_76 = arith.constant 0 : index
    %121 = vector.load %arg9[%c0_74, %c0_75, %c0_76] : memref<2x16x16xf32, #tpu.memory_space<vmem>>, vector<2x16x16xf32>
    tpu.vector_store %arg9[%c0_74, %c0_75, %c0_76], %120 {strides = array<i32>} : memref<2x16x16xf32, #tpu.memory_space<vmem>>, vector<2x16x16xf32>,
    return
  }
  func.func @transform_0(%arg0: i32) -> (i32, i32, i32) {
    %c0_i32 = arith.constant 0 : i32
    %c0_i32_0 = arith.constant 0 : i32
    %c0_i32_1 = arith.constant 0 : i32
    return %arg0, %c0_i32, %c0_i32_0 : i32, i32, i32
  }
  func.func @transform_1(%arg0: i32) -> (i32, i32) {
    %c0_i32 = arith.constant 0 : i32
    %c0_i32_0 = arith.constant 0 : i32
    %c0_i32_1 = arith.constant 0 : i32
    return %c0_i32, %c0_i32_0 : i32, i32
  }
  func.func @transform_2(%arg0: i32) -> (i32, i32) {
    %c0_i32 = arith.constant 0 : i32
    %c0_i32_0 = arith.constant 0 : i32
    %c0_i32_1 = arith.constant 0 : i32
    return %c0_i32, %c0_i32_0 : i32, i32
  }
  func.func @transform_3(%arg0: i32) -> (i32, i32, i32, i32) {
    %c0_i32 = arith.constant 0 : i32
    %c0_i32_0 = arith.constant 0 : i32
    %c0_i32_1 = arith.constant 0 : i32
    %c0_i32_2 = arith.constant 0 : i32
    %c0_i32_3 = arith.constant 0 : i32
    return %c0_i32, %c0_i32_0, %c0_i32_1, %c0_i32_2 : i32, i32, i32, i32
  }
  func.func @transform_4(%arg0: i32) -> (i32, i32, i32, i32) {
    %c0_i32 = arith.constant 0 : i32
    %c0_i32_0 = arith.constant 0 : i32
    %c0_i32_1 = arith.constant 0 : i32
    %c0_i32_2 = arith.constant 0 : i32
    %c0_i32_3 = arith.constant 0 : i32
    return %c0_i32, %c0_i32_0, %c0_i32_1, %c0_i32_2 : i32, i32, i32, i32
  }
  func.func @transform_5(%arg0: i32) -> (i32, i32, i32, i32) {
    %c0_i32 = arith.constant 0 : i32
    %c0_i32_0 = arith.constant 0 : i32
    %c0_i32_1 = arith.constant 0 : i32
    %c0_i32_2 = arith.constant 0 : i32
    %c0_i32_3 = arith.constant 0 : i32
    return %c0_i32, %c0_i32_0, %c0_i32_1, %c0_i32_2 : i32, i32, i32, i32
  }
  func.func @transform_6(%arg0: i32) -> (i32, i32) {
    %c0_i32 = arith.constant 0 : i32
    %c0_i32_0 = arith.constant 0 : i32
    %c0_i32_1 = arith.constant 0 : i32
    return %c0_i32, %c0_i32_0 : i32, i32
  }
  func.func @transform_7(%arg0: i32) -> (i32, i32) {
    %c0_i32 = arith.constant 0 : i32
    %c0_i32_0 = arith.constant 0 : i32
    %c0_i32_1 = arith.constant 0 : i32
    return %c0_i32, %c0_i32_0 : i32, i32
  }
  func.func @transform_8(%arg0: i32) -> (i32, i32, i32) {
    %c0_i32 = arith.constant 0 : i32
    %c0_i32_0 = arith.constant 0 : i32
    %c0_i32_1 = arith.constant 0 : i32
    return %arg0, %c0_i32, %c0_i32_0 : i32, i32, i32
  }
}

</mosaic_0001>

<llo_original>
// kernel: tpu_custom_call.1
$region0: #{tpu_custom_call.1}
  #allocation0 [shape = 'u32[]', space=smem, size = 0x4, offset = 0x4, fixed_abs, tag = 'smem constant byte address 0x4 - core index']
  #allocation1 [shape = 'u32[144,128]{1,0:T(1,128)}', space=vmem, size = 0x12000, scoped, tag = 'internal scratch']
  %s0 = inlined_call_operand.vmem [shape: f32[2,8,32], index: 0, kind: input, shape index: {}]
  %s1 = inlined_call_operand.vmem [shape: bf16[32,32], index: 1, kind: input, shape index: {}]
  %s2 = inlined_call_operand.vmem [shape: f32[1,32], index: 2, kind: input, shape index: {}]
  %s3 = inlined_call_operand.vmem [shape: bf16[2,2,96,32], index: 3, kind: input, shape index: {}]
  %s4 = inlined_call_operand.vmem [shape: f32[2,2,1,32], index: 4, kind: input, shape index: {}]
  %s5 = inlined_call_operand.vmem [shape: f32[2,2,1,32], index: 5, kind: input, shape index: {}]
  %s6 = inlined_call_operand.vmem [shape: bf16[32,16], index: 6, kind: input, shape index: {}]
  %s7 = inlined_call_operand.vmem [shape: f32[1,16], index: 7, kind: input, shape index: {}]
  %s8 = inlined_call_operand.hbm [shape: f32[2,16,16], index: 8, kind: output, shape index: {}]
  %s9 = sld [smem:[#allocation0]]
  $region42: #{tpu_custom_call.1} parent=0
    _
  %s11 = ssub.s32 1, %s9
  %s12 = scalar_select 0, %s11, %s9
  $region1: #{tpu_custom_call.1} parent=0
    #allocation2 [shape = 'u8[16384]{0}', space=vmem, size = 0x4000, scoped, tag = 'output window, operand 0, single buffered']
    #allocation3 [shape = 's32[1]{0}', space=sflag, size = 0x4, scoped, tag = 'scoped memory for tpu_custom_call.1']
    %13 = vsyncpa [#allocation3], 0
    // Predicated region
    $region2: #{tpu_custom_call.1} parent=1 // pred_check
      _
    $region3: #{tpu_custom_call.1} parent=1 // pred_check_branch
      %15 = sbr.rel (0) target = $region5
    $region4: #{tpu_custom_call.1} parent=1 // pred_region
      _
    $region5: #{tpu_custom_call.1} parent=1 // pred_fallthru
      _
    // Predicated region
    $region6: #{tpu_custom_call.1} parent=1 // pred_check
      _
    $region7: #{tpu_custom_call.1} parent=1 // pred_check_branch
      %17 = sbr.rel (0) target = $region9
    $region8: #{tpu_custom_call.1} parent=1 // pred_region
      _
    $region9: #{tpu_custom_call.1} parent=1 // pred_fallthru
      _
    // Predicated region
    $region10: #{tpu_custom_call.1} parent=1 // pred_check
      _
    $region11: #{tpu_custom_call.1} parent=1 // pred_check_branch
      %19 = sbr.rel (0) target = $region13
    $region12: #{tpu_custom_call.1} parent=1 // pred_region
      _
    $region13: #{tpu_custom_call.1} parent=1 // pred_fallthru
      _
    // Predicated region
    $region14: #{tpu_custom_call.1} parent=1 // pred_check
      _
    $region15: #{tpu_custom_call.1} parent=1 // pred_check_branch
      %21 = sbr.rel (0) target = $region17
    $region16: #{tpu_custom_call.1} parent=1 // pred_region
      _
    $region17: #{tpu_custom_call.1} parent=1 // pred_fallthru
      _
    // Predicated region
    $region18: #{tpu_custom_call.1} parent=1 // pred_check
      _
    $region19: #{tpu_custom_call.1} parent=1 // pred_check_branch
      %23 = sbr.rel (0) target = $region21
    $region20: #{tpu_custom_call.1} parent=1 // pred_region
      _
    $region21: #{tpu_custom_call.1} parent=1 // pred_fallthru
      _
    // Predicated region
    $region22: #{tpu_custom_call.1} parent=1 // pred_check
      _
    $region23: #{tpu_custom_call.1} parent=1 // pred_check_branch
      %25 = sbr.rel (0) target = $region25
    $region24: #{tpu_custom_call.1} parent=1 // pred_region
      _
    $region25: #{tpu_custom_call.1} parent=1 // pred_fallthru
      _
    // Predicated region
    $region26: #{tpu_custom_call.1} parent=1 // pred_check
      _
    $region27: #{tpu_custom_call.1} parent=1 // pred_check_branch
      %27 = sbr.rel (0) target = $region29
    $region28: #{tpu_custom_call.1} parent=1 // pred_region
      _
    $region29: #{tpu_custom_call.1} parent=1 // pred_fallthru
      _
    // Predicated region
    $region30: #{tpu_custom_call.1} parent=1 // pred_check
      _
    $region31: #{tpu_custom_call.1} parent=1 // pred_check_branch
      %29 = sbr.rel (0) target = $region33
    $region32: #{tpu_custom_call.1} parent=1 // pred_region
      _
    $region33: #{tpu_custom_call.1} parent=1 // pred_fallthru
      _
    %v31 = vld [vmem:[%s0] sm:$0xff]
    %v32 = vld [vmem:[%s0 + $0x8] sm:$0xff]
    %v33 = vpack.c.bf16 %v32, %v31
    %v34 = vld [vmem:[%s1] sm:$0xf]
    %v35 = vld [vmem:[%s1 + $0x4] sm:$0xf]
    %v36 = vld [vmem:[%s1 + $0x8] sm:$0xf]
    %v37 = vld [vmem:[%s1 + $0xc] sm:$0xf]
    %v38 = vld [vmem:[%s2] sm:$0x1]
    %v40 = vlaneseq
    %v41 = vshrl.u32 %v40, 7
    %v42 = vsub.s32 0, %v41
    %v43 = vrot.slane %v38, %v42
    %v49 = vunpack.c.l.b16 %v34
    %v50 = vunpack.c.l.b16 %v35
    %v51 = vunpack.c.l.b16 %v36
    %v52 = vunpack.c.l.b16 %v37
    %v53 = vpack.c.b16 %v50, %v49
    %v54 = vpack.c.b16 %v52, %v51
    %vm57 = vcmask 261120
    %v59 = vsel %vm57, %v33, 0
    %61 = vmatprep.subr.bf16.mxu0 0
    %62 = vmatpush1.bf16.msra.mxu0 0
    %63 = vmatprep.subr.bf16.mxu0 0
    %64 = vmatpush1.bf16.msra.mxu0 0
    %65 = vmatprep.subr.bf16.mxu0 0
    %66 = vmatpush1.bf16.msra.mxu0 0
    %67 = vmatprep.subr.bf16.mxu0 0
    %68 = vmatpush1.bf16.msra.mxu0 0
    %69 = vmatprep.subr.bf16.mxu0 0
    %70 = vmatpush1.bf16.msra.mxu0 0
    %71 = vmatprep.subr.bf16.mxu0 0
    %72 = vmatpush1.bf16.msra.mxu0 0
    %73 = vmatprep.subr.bf16.mxu0 0
    %74 = vmatpush1.bf16.msra.mxu0 %v54
    %75 = vmatprep.subr.bf16.mxu0 0
    %76 = vmatpush1.bf16.msra.mxu0 %v53
    %77 = vmatprep.subr.bf16.mxu0 0
    %78 = vmatpush2.bf16.msra.mxu0 0
    %79 = vmatprep.subr.bf16.mxu0 0
    %80 = vmatpush2.bf16.msra.mxu0 0
    %81 = vmatprep.subr.bf16.mxu0 0
    %82 = vmatpush2.bf16.msra.mxu0 0
    %83 = vmatprep.subr.bf16.mxu0 0
    %84 = vmatpush2.bf16.msra.mxu0 0
    %85 = vmatprep.subr.bf16.mxu0 0
    %86 = vmatpush2.bf16.msra.mxu0 0
    %87 = vmatprep.subr.bf16.mxu0 0
    %88 = vmatpush2.bf16.msra.mxu0 0
    %89 = vmatprep.subr.bf16.mxu0 0
    %90 = vmatpush2.bf16.msra.mxu0 0
    %91 = vmatprep.subr.bf16.mxu0 0
    %92 = vmatpush2.bf16.msra.mxu0 0
    %93 = vmatprep.mubr.bf16.mxu0 0
    %94 = vmatmul.mubr.bf16.gmra.mxu0 %v59
    %v95 = vpop.f32.mrf.mxu0
    %v96 = vadd.f32 %v43, %v95
    %v97 = vpop.f32.mrf.mxu0
    %v98 = vpop.f32.mrf.mxu0
    %v99 = vadd.f32 %v43, %v98
    %v100 = vpop.f32.mrf.mxu0
    %101 = vdwg.mxu0
    %v104 = vcombine.high %v96, %v96
    %v106 = vunpack.c.l.s4 1966171168
    %v107 = vunpack.c.0.s8 %v106
    %v108 = vlaneseq
    %v109 = vshrl.u32 %v108, 7
    %v110 = vsub.s32 %v107, %v109
    %v111 = vrot.slane %v96, %v110
    %v113 = vunpack.c.l.s4 1966171168
    %v114 = vunpack.c.0.s8 %v113
    %v115 = vlaneseq
    %v116 = vshrl.u32 %v115, 7
    %v117 = vsub.s32 %v114, %v116
    %v118 = vrot.slane %v104, %v117
    %v119 = vcombine.high %v111, %v111
    %v120 = vcombine.high %v118, %v118
    %v122 = vunpack.c.l.s4 1966171168
    %v123 = vunpack.c.0.s8 %v122
    %v124 = vlaneseq
    %v125 = vshrl.u32 %v124, 7
    %v126 = vsub.s32 %v123, %v125
    %v127 = vrot.slane %v111, %v126
    %v129 = vunpack.c.l.s4 1966171168
    %v130 = vunpack.c.0.s8 %v129
    %v131 = vlaneseq
    %v132 = vshrl.u32 %v131, 7
    %v133 = vsub.s32 %v130, %v132
    %v134 = vrot.slane %v118, %v133
    %v136 = vunpack.c.l.s4 1966171168
    %v137 = vunpack.c.0.s8 %v136
    %v138 = vlaneseq
    %v139 = vshrl.u32 %v138, 7
    %v140 = vsub.s32 %v137, %v139
    %v141 = vrot.slane %v119, %v140
    %v143 = vunpack.c.l.s4 1966171168
    %v144 = vunpack.c.0.s8 %v143
    %v145 = vlaneseq
    %v146 = vshrl.u32 %v145, 7
    %v147 = vsub.s32 %v144, %v146
    %v148 = vrot.slane %v120, %v147
    %v149 = vcombine.high %v127, %v127
    %v150 = vcombine.high %v134, %v134
    %v151 = vcombine.high %v141, %v141
    %v152 = vcombine.high %v148, %v148
    %v153 = vcombine.high %v99, %v99
    %v155 = vunpack.c.l.s4 1966171168
    %v156 = vunpack.c.0.s8 %v155
    %v157 = vlaneseq
    %v158 = vshrl.u32 %v157, 7
    %v159 = vsub.s32 %v156, %v158
    %v160 = vrot.slane %v99, %v159
    %v162 = vunpack.c.l.s4 1966171168
    %v163 = vunpack.c.0.s8 %v162
    %v164 = vlaneseq
    %v165 = vshrl.u32 %v164, 7
    %v166 = vsub.s32 %v163, %v165
    %v167 = vrot.slane %v153, %v166
    %v168 = vcombine.high %v160, %v160
    %v169 = vcombine.high %v167, %v167
    %v171 = vunpack.c.l.s4 1966171168
    %v172 = vunpack.c.0.s8 %v171
    %v173 = vlaneseq
    %v174 = vshrl.u32 %v173, 7
    %v175 = vsub.s32 %v172, %v174
    %v176 = vrot.slane %v160, %v175
    %v178 = vunpack.c.l.s4 1966171168
    %v179 = vunpack.c.0.s8 %v178
    %v180 = vlaneseq
    %v181 = vshrl.u32 %v180, 7
    %v182 = vsub.s32 %v179, %v181
    %v183 = vrot.slane %v167, %v182
    %v185 = vunpack.c.l.s4 1966171168
    %v186 = vunpack.c.0.s8 %v185
    %v187 = vlaneseq
    %v188 = vshrl.u32 %v187, 7
    %v189 = vsub.s32 %v186, %v188
    %v190 = vrot.slane %v168, %v189
    %v192 = vunpack.c.l.s4 1966171168
    %v193 = vunpack.c.0.s8 %v192
    %v194 = vlaneseq
    %v195 = vshrl.u32 %v194, 7
    %v196 = vsub.s32 %v193, %v195
    %v197 = vrot.slane %v169, %v196
    %v198 = vcombine.high %v176, %v176
    %v199 = vcombine.high %v183, %v183
    %v200 = vcombine.high %v190, %v190
    %v201 = vcombine.high %v197, %v197
    %v202 = vlaneseq
    %v203 = vshrl.u32 %v202, 7
    %v204 = vsub.s32 0, %v203
    %v205 = vrot.slane %v127, %v204
    %v206 = vlaneseq
    %v207 = vshrl.u32 %v206, 7
    %v208 = vsub.s32 0, %v207
    %v209 = vrot.slane %v141, %v208
    %v210 = vlaneseq
    %v211 = vshrl.u32 %v210, 7
    %v212 = vsub.s32 0, %v211
    %v213 = vrot.slane %v149, %v212
    %v214 = vlaneseq
    %v215 = vshrl.u32 %v214, 7
    %v216 = vsub.s32 0, %v215
    %v217 = vrot.slane %v151, %v216
    %v218 = vlaneseq
    %v219 = vshrl.u32 %v218, 7
    %v220 = vsub.s32 0, %v219
    %v221 = vrot.slane %v134, %v220
    %v222 = vlaneseq
    %v223 = vshrl.u32 %v222, 7
    %v224 = vsub.s32 0, %v223
    %v225 = vrot.slane %v148, %v224
    %v226 = vlaneseq
    %v227 = vshrl.u32 %v226, 7
    %v228 = vsub.s32 0, %v227
    %v229 = vrot.slane %v150, %v228
    %v230 = vlaneseq
    %v231 = vshrl.u32 %v230, 7
    %v232 = vsub.s32 0, %v231
    %v233 = vrot.slane %v152, %v232
    %v234 = vlaneseq
    %v235 = vshrl.u32 %v234, 7
    %v236 = vsub.s32 0, %v235
    %v237 = vrot.slane %v176, %v236
    %v238 = vlaneseq
    %v239 = vshrl.u32 %v238, 7
    %v240 = vsub.s32 0, %v239
    %v241 = vrot.slane %v190, %v240
    %v242 = vlaneseq
    %v243 = vshrl.u32 %v242, 7
    %v244 = vsub.s32 0, %v243
    %v245 = vrot.slane %v198, %v244
    %v246 = vlaneseq
    %v247 = vshrl.u32 %v246, 7
    %v248 = vsub.s32 0, %v247
    %v249 = vrot.slane %v200, %v248
    %v250 = vlaneseq
    %v251 = vshrl.u32 %v250, 7
    %v252 = vsub.s32 0, %v251
    %v253 = vrot.slane %v183, %v252
    %v254 = vlaneseq
    %v255 = vshrl.u32 %v254, 7
    %v256 = vsub.s32 0, %v255
    %v257 = vrot.slane %v197, %v256
    %v258 = vlaneseq
    %v259 = vshrl.u32 %v258, 7
    %v260 = vsub.s32 0, %v259
    %v261 = vrot.slane %v199, %v260
    %v262 = vlaneseq
    %v263 = vshrl.u32 %v262, 7
    %v264 = vsub.s32 0, %v263
    %v265 = vrot.slane %v201, %v264
    %v266 = vcombine.low %v205, %v209
    %v267 = vcombine.low %v213, %v217
    %v269 = vunpack.c.l.s4 1983009808
    %v270 = vunpack.c.0.s8 %v269
    %v271 = vlaneseq
    %v272 = vshrl.u32 %v271, 7
    %v273 = vsub.s32 %v270, %v272
    %v274 = vrot.slane %v266, %v273
    %v276 = vunpack.c.l.s4 1983009808
    %v277 = vunpack.c.0.s8 %v276
    %v278 = vlaneseq
    %v279 = vshrl.u32 %v278, 7
    %v280 = vsub.s32 %v277, %v279
    %v281 = vrot.slane %v267, %v280
    %v282 = vcombine.low %v274, %v281
    %v283 = vcombine.low %v221, %v225
    %v284 = vcombine.low %v229, %v233
    %v286 = vunpack.c.l.s4 1983009808
    %v287 = vunpack.c.0.s8 %v286
    %v288 = vlaneseq
    %v289 = vshrl.u32 %v288, 7
    %v290 = vsub.s32 %v287, %v289
    %v291 = vrot.slane %v283, %v290
    %v293 = vunpack.c.l.s4 1983009808
    %v294 = vunpack.c.0.s8 %v293
    %v295 = vlaneseq
    %v296 = vshrl.u32 %v295, 7
    %v297 = vsub.s32 %v294, %v296
    %v298 = vrot.slane %v284, %v297
    %v299 = vcombine.low %v291, %v298
    %v300 = vcombine.low %v237, %v241
    %v301 = vcombine.low %v245, %v249
    %v303 = vunpack.c.l.s4 1983009808
    %v304 = vunpack.c.0.s8 %v303
    %v305 = vlaneseq
    %v306 = vshrl.u32 %v305, 7
    %v307 = vsub.s32 %v304, %v306
    %v308 = vrot.slane %v300, %v307
    %v310 = vunpack.c.l.s4 1983009808
    %v311 = vunpack.c.0.s8 %v310
    %v312 = vlaneseq
    %v313 = vshrl.u32 %v312, 7
    %v314 = vsub.s32 %v311, %v313
    %v315 = vrot.slane %v301, %v314
    %v316 = vcombine.low %v308, %v315
    %v317 = vcombine.low %v253, %v257
    %v318 = vcombine.low %v261, %v265
    %v320 = vunpack.c.l.s4 1983009808
    %v321 = vunpack.c.0.s8 %v320
    %v322 = vlaneseq
    %v323 = vshrl.u32 %v322, 7
    %v324 = vsub.s32 %v321, %v323
    %v325 = vrot.slane %v317, %v324
    %v327 = vunpack.c.l.s4 1983009808
    %v328 = vunpack.c.0.s8 %v327
    %v329 = vlaneseq
    %v330 = vshrl.u32 %v329, 7
    %v331 = vsub.s32 %v328, %v330
    %v332 = vrot.slane %v318, %v331
    %v333 = vcombine.low %v325, %v332
    %v338 = vpack.c.bf16 %v299, %v282
    %v339 = vpack.c.bf16 %v333, %v316
    %v341 = vshrl.u32 %v338, 16
    %v343 = vrot.slane %v341, 7
    %v344 = vshll.u32 %v338, 16
    %v346 = vor.u32 %v343, %v344
    %v348 = vshrl.u32 %v339, 16
    %v350 = vrot.slane %v348, 7
    %v351 = vshll.u32 %v339, 16
    %v353 = vor.u32 %v350, %v351
    %vm356 = vcmask 1040384
    %vm357 = vsmask.f32 256
    %vm358 = vmand %vm356, %vm357
    %v359 = vsel %vm358, 0, %v346
    %v360 = vsel %vm358, 0, %v353
    %v361 = vrot.slane %v344, 1
    %v362 = vor.u32 %v341, %v361
    %v363 = vrot.slane %v351, 1
    %v364 = vor.u32 %v348, %v363
    %vm367 = vcmask 1047552
    %vm368 = vsmask.f32 7424
    %vm369 = vmand %vm367, %vm368
    %v370 = vsel %vm369, %v362, 0
    %v371 = vsel %vm369, %v364, 0
    %374 = vrot.lane.b32.xlu0 %v338, 32
    %v375 = vpop.permute.xlu0 %374
    %376 = vrot.lane.b32.xlu0 %v339, 32
    %v377 = vpop.permute.xlu0 %376
    %380 = vrot.lane.b32.xlu0 %v370, 64
    %v381 = vpop.permute.xlu0 %380
    %382 = vrot.lane.b32.xlu0 %v371, 64
    %v383 = vpop.permute.xlu0 %382
    %v386 = vsel %vm57, %v359, %v375
    %v389 = vsel %vm57, %v360, %v377
    %vm390 = vcmask 523264
    %v392 = vsel %vm390, %v386, %v381
    %v394 = vsel %vm390, %v389, %v383
    %v395 = vld [vmem:[%s3] sm:$0xf]
    %v396 = vld [vmem:[%s3 + $0x4] sm:$0xf]
    %v397 = vld [vmem:[%s3 + $0x8] sm:$0xf]
    %v398 = vld [vmem:[%s3 + $0xc] sm:$0xf]
    %v399 = vld [vmem:[%s3 + $0x10] sm:$0xf]
    %v400 = vld [vmem:[%s3 + $0x14] sm:$0xf]
    %v401 = vld [vmem:[%s3 + $0x18] sm:$0xf]
    %v402 = vld [vmem:[%s3 + $0x1c] sm:$0xf]
    %v403 = vld [vmem:[%s3 + $0x20] sm:$0xf]
    %v404 = vld [vmem:[%s3 + $0x24] sm:$0xf]
    %v405 = vld [vmem:[%s3 + $0x28] sm:$0xf]
    %v406 = vld [vmem:[%s3 + $0x2c] sm:$0xf]
    %v419 = vunpack.c.l.b16 %v395
    %v420 = vunpack.c.l.b16 %v396
    %v421 = vunpack.c.l.b16 %v397
    %v422 = vunpack.c.l.b16 %v398
    %v423 = vunpack.c.l.b16 %v399
    %v424 = vunpack.c.l.b16 %v400
    %v425 = vunpack.c.l.b16 %v401
    %v426 = vunpack.c.l.b16 %v402
    %v427 = vunpack.c.l.b16 %v403
    %v428 = vunpack.c.l.b16 %v404
    %v429 = vunpack.c.l.b16 %v405
    %v430 = vunpack.c.l.b16 %v406
    %v431 = vpack.c.b16 %v420, %v419
    %v432 = vpack.c.b16 %v422, %v421
    %v433 = vpack.c.b16 %v424, %v423
    %v434 = vpack.c.b16 %v426, %v425
    %v435 = vpack.c.b16 %v428, %v427
    %v436 = vpack.c.b16 %v430, %v429
    %vm443 = vcmask 785408
    %v444 = vsel %vm443, %v392, 0
    %v446 = vsel %vm443, %v394, 0
    %448 = vmatprep.subr.bf16.mxu0 0
    %449 = vmatpush1.bf16.msra.mxu0 0
    %450 = vmatprep.subr.bf16.mxu0 0
    %451 = vmatpush1.bf16.msra.mxu0 0
    %452 = vmatprep.subr.bf16.mxu0 0
    %453 = vmatpush1.bf16.msra.mxu0 %v436
    %454 = vmatprep.subr.bf16.mxu0 0
    %455 = vmatpush1.bf16.msra.mxu0 %v435
    %456 = vmatprep.subr.bf16.mxu0 0
    %457 = vmatpush1.bf16.msra.mxu0 %v434
    %458 = vmatprep.subr.bf16.mxu0 0
    %459 = vmatpush1.bf16.msra.mxu0 %v433
    %460 = vmatprep.subr.bf16.mxu0 0
    %461 = vmatpush1.bf16.msra.mxu0 %v432
    %462 = vmatprep.subr.bf16.mxu0 0
    %463 = vmatpush1.bf16.msra.mxu0 %v431
    %464 = vmatprep.subr.bf16.mxu0 0
    %465 = vmatpush2.bf16.msra.mxu0 0
    %466 = vmatprep.subr.bf16.mxu0 0
    %467 = vmatpush2.bf16.msra.mxu0 0
    %468 = vmatprep.subr.bf16.mxu0 0
    %469 = vmatpush2.bf16.msra.mxu0 0
    %470 = vmatprep.subr.bf16.mxu0 0
    %471 = vmatpush2.bf16.msra.mxu0 0
    %472 = vmatprep.subr.bf16.mxu0 0
    %473 = vmatpush2.bf16.msra.mxu0 0
    %474 = vmatprep.subr.bf16.mxu0 0
    %475 = vmatpush2.bf16.msra.mxu0 0
    %476 = vmatprep.subr.bf16.mxu0 0
    %477 = vmatpush2.bf16.msra.mxu0 0
    %478 = vmatprep.subr.bf16.mxu0 0
    %479 = vmatpush2.bf16.msra.mxu0 0
    %480 = vmatprep.mubr.bf16.mxu0 0
    %481 = vmatmul.mubr.bf16.gmra.mxu0 %v444
    %v482 = vpop.f32.mrf.mxu0
    %v483 = vadd.f32 0.0, %v482
    %v484 = vpop.f32.mrf.mxu0
    %v485 = vpop.f32.mrf.mxu0
    %v486 = vadd.f32 0.0, %v485
    %v487 = vpop.f32.mrf.mxu0
    %488 = vmatprep.mubr.bf16.mxu0 0
    %489 = vmatmul.mubr.bf16.gmra.mxu0 %v446
    %v490 = vpop.f32.mrf.mxu0
    %v491 = vadd.f32 0.0, %v490
    %v492 = vpop.f32.mrf.mxu0
    %v493 = vpop.f32.mrf.mxu0
    %v494 = vadd.f32 0.0, %v493
    %v495 = vpop.f32.mrf.mxu0
    %496 = vdwg.mxu0
    %v497 = vld [vmem:[%s4] sm:$0x1]
    %v499 = vlaneseq
    %v500 = vshrl.u32 %v499, 7
    %v501 = vsub.s32 0, %v500
    %v502 = vrot.slane %v497, %v501
    %v504 = vmul.f32 %v483, %v502
    %v505 = vmul.f32 %v486, %v502
    %v506 = vmul.f32 %v491, %v502
    %v507 = vmul.f32 %v494, %v502
    %v508 = vld [vmem:[%s5] sm:$0x1]
    %v510 = vlaneseq
    %v511 = vshrl.u32 %v510, 7
    %v512 = vsub.s32 0, %v511
    %v513 = vrot.slane %v508, %v512
    %v515 = vadd.f32 %v504, %v513
    %v516 = vadd.f32 %v505, %v513
    %v517 = vadd.f32 %v506, %v513
    %v518 = vadd.f32 %v507, %v513
    %v519 = vmax.f32 %v515, 0.0
    %v520 = vmax.f32 %v516, 0.0
    %v521 = vmax.f32 %v517, 0.0
    %v522 = vmax.f32 %v518, 0.0
    %v523 = vpack.c.bf16 %v520, %v519
    %v524 = vpack.c.bf16 %v522, %v521
    %v526 = vshrl.u32 %v523, 16
    %v528 = vrot.slane %v526, 7
    %v529 = vshll.u32 %v523, 16
    %v531 = vor.u32 %v528, %v529
    %v533 = vshrl.u32 %v524, 16
    %v535 = vrot.slane %v533, 7
    %v536 = vshll.u32 %v524, 16
    %v538 = vor.u32 %v535, %v536
    %v541 = vsel %vm358, 0, %v531
    %v542 = vsel %vm358, 0, %v538
    %v543 = vrot.slane %v529, 1
    %v544 = vor.u32 %v526, %v543
    %v545 = vrot.slane %v536, 1
    %v546 = vor.u32 %v533, %v545
    %v549 = vsel %vm369, %v544, 0
    %v550 = vsel %vm369, %v546, 0
    %553 = vrot.lane.b32.xlu0 %v523, 32
    %v554 = vpop.permute.xlu0 %553
    %555 = vrot.lane.b32.xlu0 %v524, 32
    %v556 = vpop.permute.xlu0 %555
    %559 = vrot.lane.b32.xlu0 %v549, 64
    %v560 = vpop.permute.xlu0 %559
    %561 = vrot.lane.b32.xlu0 %v550, 64
    %v562 = vpop.permute.xlu0 %561
    %v565 = vsel %vm57, %v541, %v554
    %v568 = vsel %vm57, %v542, %v556
    %v570 = vsel %vm390, %v565, %v560
    %v572 = vsel %vm390, %v568, %v562
    %s573 = scalar_lea.vmem %s3, 48
    %v574 = vld [vmem:[%s573] sm:$0xf]
    %v575 = vld [vmem:[%s573 + $0x4] sm:$0xf]
    %v576 = vld [vmem:[%s573 + $0x8] sm:$0xf]
    %v577 = vld [vmem:[%s573 + $0xc] sm:$0xf]
    %v578 = vld [vmem:[%s573 + $0x10] sm:$0xf]
    %v579 = vld [vmem:[%s573 + $0x14] sm:$0xf]
    %v580 = vld [vmem:[%s573 + $0x18] sm:$0xf]
    %v581 = vld [vmem:[%s573 + $0x1c] sm:$0xf]
    %v582 = vld [vmem:[%s573 + $0x20] sm:$0xf]
    %v583 = vld [vmem:[%s573 + $0x24] sm:$0xf]
    %v584 = vld [vmem:[%s573 + $0x28] sm:$0xf]
    %v585 = vld [vmem:[%s573 + $0x2c] sm:$0xf]
    %v598 = vunpack.c.l.b16 %v574
    %v599 = vunpack.c.l.b16 %v575
    %v600 = vunpack.c.l.b16 %v576
    %v601 = vunpack.c.l.b16 %v577
    %v602 = vunpack.c.l.b16 %v578
    %v603 = vunpack.c.l.b16 %v579
    %v604 = vunpack.c.l.b16 %v580
    %v605 = vunpack.c.l.b16 %v581
    %v606 = vunpack.c.l.b16 %v582
    %v607 = vunpack.c.l.b16 %v583
    %v608 = vunpack.c.l.b16 %v584
    %v609 = vunpack.c.l.b16 %v585
    %v610 = vpack.c.b16 %v599, %v598
    %v611 = vpack.c.b16 %v601, %v600
    %v612 = vpack.c.b16 %v603, %v602
    %v613 = vpack.c.b16 %v605, %v604
    %v614 = vpack.c.b16 %v607, %v606
    %v615 = vpack.c.b16 %v609, %v608
    %v622 = vsel %vm443, %v570, 0
    %v624 = vsel %vm443, %v572, 0
    %626 = vmatprep.subr.bf16.mxu0 0
    %627 = vmatpush1.bf16.msra.mxu0 0
    %628 = vmatprep.subr.bf16.mxu0 0
    %629 = vmatpush1.bf16.msra.mxu0 0
    %630 = vmatprep.subr.bf16.mxu0 0
    %631 = vmatpush1.bf16.msra.mxu0 %v615
    %632 = vmatprep.subr.bf16.mxu0 0
    %633 = vmatpush1.bf16.msra.mxu0 %v614
    %634 = vmatprep.subr.bf16.mxu0 0
    %635 = vmatpush1.bf16.msra.mxu0 %v613
    %636 = vmatprep.subr.bf16.mxu0 0
    %637 = vmatpush1.bf16.msra.mxu0 %v612
    %638 = vmatprep.subr.bf16.mxu0 0
    %639 = vmatpush1.bf16.msra.mxu0 %v611
    %640 = vmatprep.subr.bf16.mxu0 0
    %641 = vmatpush1.bf16.msra.mxu0 %v610
    %642 = vmatprep.subr.bf16.mxu0 0
    %643 = vmatpush2.bf16.msra.mxu0 0
    %644 = vmatprep.subr.bf16.mxu0 0
    %645 = vmatpush2.bf16.msra.mxu0 0
    %646 = vmatprep.subr.bf16.mxu0 0
    %647 = vmatpush2.bf16.msra.mxu0 0
    %648 = vmatprep.subr.bf16.mxu0 0
    %649 = vmatpush2.bf16.msra.mxu0 0
    %650 = vmatprep.subr.bf16.mxu0 0
    %651 = vmatpush2.bf16.msra.mxu0 0
    %652 = vmatprep.subr.bf16.mxu0 0
    %653 = vmatpush2.bf16.msra.mxu0 0
    %654 = vmatprep.subr.bf16.mxu0 0
    %655 = vmatpush2.bf16.msra.mxu0 0
    %656 = vmatprep.subr.bf16.mxu0 0
    %657 = vmatpush2.bf16.msra.mxu0 0
    %658 = vmatprep.mubr.bf16.mxu0 0
    %659 = vmatmul.mubr.bf16.gmra.mxu0 %v622
    %v660 = vpop.f32.mrf.mxu0
    %v661 = vadd.f32 0.0, %v660
    %v662 = vpop.f32.mrf.mxu0
    %v663 = vpop.f32.mrf.mxu0
    %v664 = vadd.f32 0.0, %v663
    %v665 = vpop.f32.mrf.mxu0
    %666 = vmatprep.mubr.bf16.mxu0 0
    %667 = vmatmul.mubr.bf16.gmra.mxu0 %v624
    %v668 = vpop.f32.mrf.mxu0
    %v669 = vadd.f32 0.0, %v668
    %v670 = vpop.f32.mrf.mxu0
    %v671 = vpop.f32.mrf.mxu0
    %v672 = vadd.f32 0.0, %v671
    %v673 = vpop.f32.mrf.mxu0
    %674 = vdwg.mxu0
    %s675 = scalar_lea.vmem %s4, 1
    %v676 = vld [vmem:[%s675] sm:$0x1]
    %v678 = vlaneseq
    %v679 = vshrl.u32 %v678, 7
    %v680 = vsub.s32 0, %v679
    %v681 = vrot.slane %v676, %v680
    %v683 = vmul.f32 %v661, %v681
    %v684 = vmul.f32 %v664, %v681
    %v685 = vmul.f32 %v669, %v681
    %v686 = vmul.f32 %v672, %v681
    %s687 = scalar_lea.vmem %s5, 1
    %v688 = vld [vmem:[%s687] sm:$0x1]
    %v690 = vlaneseq
    %v691 = vshrl.u32 %v690, 7
    %v692 = vsub.s32 0, %v691
    %v693 = vrot.slane %v688, %v692
    %v695 = vadd.f32 %v683, %v693
    %v696 = vadd.f32 %v684, %v693
    %v697 = vadd.f32 %v685, %v693
    %v698 = vadd.f32 %v686, %v693
    %v699 = vmax.f32 %v695, 0.0
    %v700 = vmax.f32 %v696, 0.0
    %v701 = vmax.f32 %v697, 0.0
    %v702 = vmax.f32 %v698, 0.0
    %v703 = vadd.f32 %v699, %v282
    %v704 = vadd.f32 %v700, %v299
    %v705 = vadd.f32 %v701, %v316
    %v706 = vadd.f32 %v702, %v333
    %v707 = vpack.c.bf16 %v704, %v703
    %v708 = vpack.c.bf16 %v706, %v705
    %v710 = vshrl.u32 %v707, 16
    %v712 = vrot.slane %v710, 7
    %v713 = vshll.u32 %v707, 16
    %v715 = vor.u32 %v712, %v713
    %v717 = vshrl.u32 %v708, 16
    %v719 = vrot.slane %v717, 7
    %v720 = vshll.u32 %v708, 16
    %v722 = vor.u32 %v719, %v720
    %v725 = vsel %vm358, 0, %v715
    %v726 = vsel %vm358, 0, %v722
    %v727 = vrot.slane %v713, 1
    %v728 = vor.u32 %v710, %v727
    %v729 = vrot.slane %v720, 1
    %v730 = vor.u32 %v717, %v729
    %v733 = vsel %vm369, %v728, 0
    %v734 = vsel %vm369, %v730, 0
    %737 = vrot.lane.b32.xlu0 %v707, 32
    %v738 = vpop.permute.xlu0 %737
    %739 = vrot.lane.b32.xlu0 %v708, 32
    %v740 = vpop.permute.xlu0 %739
    %743 = vrot.lane.b32.xlu0 %v733, 64
    %v744 = vpop.permute.xlu0 %743
    %745 = vrot.lane.b32.xlu0 %v734, 64
    %v746 = vpop.permute.xlu0 %745
    %v749 = vsel %vm57, %v725, %v738
    %v752 = vsel %vm57, %v726, %v740
    %v754 = vsel %vm390, %v749, %v744
    %v756 = vsel %vm390, %v752, %v746
    %s757 = scalar_lea.vmem %s3, 96
    %v758 = vld [vmem:[%s757] sm:$0xf]
    %v759 = vld [vmem:[%s757 + $0x4] sm:$0xf]
    %v760 = vld [vmem:[%s757 + $0x8] sm:$0xf]
    %v761 = vld [vmem:[%s757 + $0xc] sm:$0xf]
    %v762 = vld [vmem:[%s757 + $0x10] sm:$0xf]
    %v763 = vld [vmem:[%s757 + $0x14] sm:$0xf]
    %v764 = vld [vmem:[%s757 + $0x18] sm:$0xf]
    %v765 = vld [vmem:[%s757 + $0x1c] sm:$0xf]
    %v766 = vld [vmem:[%s757 + $0x20] sm:$0xf]
    %v767 = vld [vmem:[%s757 + $0x24] sm:$0xf]
    %v768 = vld [vmem:[%s757 + $0x28] sm:$0xf]
    %v769 = vld [vmem:[%s757 + $0x2c] sm:$0xf]
    %v782 = vunpack.c.l.b16 %v758
    %v783 = vunpack.c.l.b16 %v759
    %v784 = vunpack.c.l.b16 %v760
    %v785 = vunpack.c.l.b16 %v761
    %v786 = vunpack.c.l.b16 %v762
    %v787 = vunpack.c.l.b16 %v763
    %v788 = vunpack.c.l.b16 %v764
    %v789 = vunpack.c.l.b16 %v765
    %v790 = vunpack.c.l.b16 %v766
    %v791 = vunpack.c.l.b16 %v767
    %v792 = vunpack.c.l.b16 %v768
    %v793 = vunpack.c.l.b16 %v769
    %v794 = vpack.c.b16 %v783, %v782
    %v795 = vpack.c.b16 %v785, %v784
    %v796 = vpack.c.b16 %v787, %v786
    %v797 = vpack.c.b16 %v789, %v788
    %v798 = vpack.c.b16 %v791, %v790
    %v799 = vpack.c.b16 %v793, %v792
    %v806 = vsel %vm443, %v754, 0
    %v808 = vsel %vm443, %v756, 0
    %810 = vmatprep.subr.bf16.mxu0 0
    %811 = vmatpush1.bf16.msra.mxu0 0
    %812 = vmatprep.subr.bf16.mxu0 0
    %813 = vmatpush1.bf16.msra.mxu0 0
    %814 = vmatprep.subr.bf16.mxu0 0
    %815 = vmatpush1.bf16.msra.mxu0 %v799
    %816 = vmatprep.subr.bf16.mxu0 0
    %817 = vmatpush1.bf16.msra.mxu0 %v798
    %818 = vmatprep.subr.bf16.mxu0 0
    %819 = vmatpush1.bf16.msra.mxu0 %v797
    %820 = vmatprep.subr.bf16.mxu0 0
    %821 = vmatpush1.bf16.msra.mxu0 %v796
    %822 = vmatprep.subr.bf16.mxu0 0
    %823 = vmatpush1.bf16.msra.mxu0 %v795
    %824 = vmatprep.subr.bf16.mxu0 0
    %825 = vmatpush1.bf16.msra.mxu0 %v794
    %826 = vmatprep.subr.bf16.mxu0 0
    %827 = vmatpush2.bf16.msra.mxu0 0
    %828 = vmatprep.subr.bf16.mxu0 0
    %829 = vmatpush2.bf16.msra.mxu0 0
    %830 = vmatprep.subr.bf16.mxu0 0
    %831 = vmatpush2.bf16.msra.mxu0 0
    %832 = vmatprep.subr.bf16.mxu0 0
    %833 = vmatpush2.bf16.msra.mxu0 0
    %834 = vmatprep.subr.bf16.mxu0 0
    %835 = vmatpush2.bf16.msra.mxu0 0
    %836 = vmatprep.subr.bf16.mxu0 0
    %837 = vmatpush2.bf16.msra.mxu0 0
    %838 = vmatprep.subr.bf16.mxu0 0
    %839 = vmatpush2.bf16.msra.mxu0 0
    %840 = vmatprep.subr.bf16.mxu0 0
    %841 = vmatpush2.bf16.msra.mxu0 0
    %842 = vmatprep.mubr.bf16.mxu0 0
    %843 = vmatmul.mubr.bf16.gmra.mxu0 %v806
    %v844 = vpop.f32.mrf.mxu0
    %v845 = vadd.f32 0.0, %v844
    %v846 = vpop.f32.mrf.mxu0
    %v847 = vpop.f32.mrf.mxu0
    %v848 = vadd.f32 0.0, %v847
    %v849 = vpop.f32.mrf.mxu0
    %850 = vmatprep.mubr.bf16.mxu0 0
    %851 = vmatmul.mubr.bf16.gmra.mxu0 %v808
    %v852 = vpop.f32.mrf.mxu0
    %v853 = vadd.f32 0.0, %v852
    %v854 = vpop.f32.mrf.mxu0
    %v855 = vpop.f32.mrf.mxu0
    %v856 = vadd.f32 0.0, %v855
    %v857 = vpop.f32.mrf.mxu0
    %858 = vdwg.mxu0
    %s859 = scalar_lea.vmem %s4, 2
    %v860 = vld [vmem:[%s859] sm:$0x1]
    %v862 = vlaneseq
    %v863 = vshrl.u32 %v862, 7
    %v864 = vsub.s32 0, %v863
    %v865 = vrot.slane %v860, %v864
    %v867 = vmul.f32 %v845, %v865
    %v868 = vmul.f32 %v848, %v865
    %v869 = vmul.f32 %v853, %v865
    %v870 = vmul.f32 %v856, %v865
    %s871 = scalar_lea.vmem %s5, 2
    %v872 = vld [vmem:[%s871] sm:$0x1]
    %v874 = vlaneseq
    %v875 = vshrl.u32 %v874, 7
    %v876 = vsub.s32 0, %v875
    %v877 = vrot.slane %v872, %v876
    %v879 = vadd.f32 %v867, %v877
    %v880 = vadd.f32 %v868, %v877
    %v881 = vadd.f32 %v869, %v877
    %v882 = vadd.f32 %v870, %v877
    %v883 = vmax.f32 %v879, 0.0
    %v884 = vmax.f32 %v880, 0.0
    %v885 = vmax.f32 %v881, 0.0
    %v886 = vmax.f32 %v882, 0.0
    %v887 = vpack.c.bf16 %v884, %v883
    %v888 = vpack.c.bf16 %v886, %v885
    %v890 = vshrl.u32 %v887, 16
    %v892 = vrot.slane %v890, 7
    %v893 = vshll.u32 %v887, 16
    %v895 = vor.u32 %v892, %v893
    %v897 = vshrl.u32 %v888, 16
    %v899 = vrot.slane %v897, 7
    %v900 = vshll.u32 %v888, 16
    %v902 = vor.u32 %v899, %v900
    %v905 = vsel %vm358, 0, %v895
    %v906 = vsel %vm358, 0, %v902
    %v907 = vrot.slane %v893, 1
    %v908 = vor.u32 %v890, %v907
    %v909 = vrot.slane %v900, 1
    %v910 = vor.u32 %v897, %v909
    %v913 = vsel %vm369, %v908, 0
    %v914 = vsel %vm369, %v910, 0
    %917 = vrot.lane.b32.xlu0 %v887, 32
    %v918 = vpop.permute.xlu0 %917
    %919 = vrot.lane.b32.xlu0 %v888, 32
    %v920 = vpop.permute.xlu0 %919
    %923 = vrot.lane.b32.xlu0 %v913, 64
    %v924 = vpop.permute.xlu0 %923
    %925 = vrot.lane.b32.xlu0 %v914, 64
    %v926 = vpop.permute.xlu0 %925
    %v929 = vsel %vm57, %v905, %v918
    %v932 = vsel %vm57, %v906, %v920
    %v934 = vsel %vm390, %v929, %v924
    %v936 = vsel %vm390, %v932, %v926
    %s937 = scalar_lea.vmem %s3, 144
    %v938 = vld [vmem:[%s937] sm:$0xf]
    %v939 = vld [vmem:[%s937 + $0x4] sm:$0xf]
    %v940 = vld [vmem:[%s937 + $0x8] sm:$0xf]
    %v941 = vld [vmem:[%s937 + $0xc] sm:$0xf]
    %v942 = vld [vmem:[%s937 + $0x10] sm:$0xf]
    %v943 = vld [vmem:[%s937 + $0x14] sm:$0xf]
    %v944 = vld [vmem:[%s937 + $0x18] sm:$0xf]
    %v945 = vld [vmem:[%s937 + $0x1c] sm:$0xf]
    %v946 = vld [vmem:[%s937 + $0x20] sm:$0xf]
    %v947 = vld [vmem:[%s937 + $0x24] sm:$0xf]
    %v948 = vld [vmem:[%s937 + $0x28] sm:$0xf]
    %v949 = vld [vmem:[%s937 + $0x2c] sm:$0xf]
    %v962 = vunpack.c.l.b16 %v938
    %v963 = vunpack.c.l.b16 %v939
    %v964 = vunpack.c.l.b16 %v940
    %v965 = vunpack.c.l.b16 %v941
    %v966 = vunpack.c.l.b16 %v942
    %v967 = vunpack.c.l.b16 %v943
    %v968 = vunpack.c.l.b16 %v944
    %v969 = vunpack.c.l.b16 %v945
    %v970 = vunpack.c.l.b16 %v946
    %v971 = vunpack.c.l.b16 %v947
    %v972 = vunpack.c.l.b16 %v948
    %v973 = vunpack.c.l.b16 %v949
    %v974 = vpack.c.b16 %v963, %v962
    %v975 = vpack.c.b16 %v965, %v964
    %v976 = vpack.c.b16 %v967, %v966
    %v977 = vpack.c.b16 %v969, %v968
    %v978 = vpack.c.b16 %v971, %v970
    %v979 = vpack.c.b16 %v973, %v972
    %v986 = vsel %vm443, %v934, 0
    %v988 = vsel %vm443, %v936, 0
    %990 = vmatprep.subr.bf16.mxu0 0
    %991 = vmatpush1.bf16.msra.mxu0 0
    %992 = vmatprep.subr.bf16.mxu0 0
    %993 = vmatpush1.bf16.msra.mxu0 0
    %994 = vmatprep.subr.bf16.mxu0 0
    %995 = vmatpush1.bf16.msra.mxu0 %v979
    %996 = vmatprep.subr.bf16.mxu0 0
    %997 = vmatpush1.bf16.msra.mxu0 %v978
    %998 = vmatprep.subr.bf16.mxu0 0
    %999 = vmatpush1.bf16.msra.mxu0 %v977
    %1000 = vmatprep.subr.bf16.mxu0 0
    %1001 = vmatpush1.bf16.msra.mxu0 %v976
    %1002 = vmatprep.subr.bf16.mxu0 0
    %1003 = vmatpush1.bf16.msra.mxu0 %v975
    %1004 = vmatprep.subr.bf16.mxu0 0
    %1005 = vmatpush1.bf16.msra.mxu0 %v974
    %1006 = vmatprep.subr.bf16.mxu0 0
    %1007 = vmatpush2.bf16.msra.mxu0 0
    %1008 = vmatprep.subr.bf16.mxu0 0
    %1009 = vmatpush2.bf16.msra.mxu0 0
    %1010 = vmatprep.subr.bf16.mxu0 0
    %1011 = vmatpush2.bf16.msra.mxu0 0
    %1012 = vmatprep.subr.bf16.mxu0 0
    %1013 = vmatpush2.bf16.msra.mxu0 0
    %1014 = vmatprep.subr.bf16.mxu0 0
    %1015 = vmatpush2.bf16.msra.mxu0 0
    %1016 = vmatprep.subr.bf16.mxu0 0
    %1017 = vmatpush2.bf16.msra.mxu0 0
    %1018 = vmatprep.subr.bf16.mxu0 0
    %1019 = vmatpush2.bf16.msra.mxu0 0
    %1020 = vmatprep.subr.bf16.mxu0 0
    %1021 = vmatpush2.bf16.msra.mxu0 0
    %1022 = vmatprep.mubr.bf16.mxu0 0
    %1023 = vmatmul.mubr.bf16.gmra.mxu0 %v986
    %v1024 = vpop.f32.mrf.mxu0
    %v1025 = vadd.f32 0.0, %v1024
    %v1026 = vpop.f32.mrf.mxu0
    %v1027 = vpop.f32.mrf.mxu0
    %v1028 = vadd.f32 0.0, %v1027
    %v1029 = vpop.f32.mrf.mxu0
    %1030 = vmatprep.mubr.bf16.mxu0 0
    %1031 = vmatmul.mubr.bf16.gmra.mxu0 %v988
    %v1032 = vpop.f32.mrf.mxu0
    %v1033 = vadd.f32 0.0, %v1032
    %v1034 = vpop.f32.mrf.mxu0
    %v1035 = vpop.f32.mrf.mxu0
    %v1036 = vadd.f32 0.0, %v1035
    %v1037 = vpop.f32.mrf.mxu0
    %1038 = vdwg.mxu0
    %s1039 = scalar_lea.vmem %s4, 3
    %v1040 = vld [vmem:[%s1039] sm:$0x1]
    %v1042 = vlaneseq
    %v1043 = vshrl.u32 %v1042, 7
    %v1044 = vsub.s32 0, %v1043
    %v1045 = vrot.slane %v1040, %v1044
    %v1047 = vmul.f32 %v1025, %v1045
    %v1048 = vmul.f32 %v1028, %v1045
    %v1049 = vmul.f32 %v1033, %v1045
    %v1050 = vmul.f32 %v1036, %v1045
    %s1051 = scalar_lea.vmem %s5, 3
    %v1052 = vld [vmem:[%s1051] sm:$0x1]
    %v1054 = vlaneseq
    %v1055 = vshrl.u32 %v1054, 7
    %v1056 = vsub.s32 0, %v1055
    %v1057 = vrot.slane %v1052, %v1056
    %v1059 = vadd.f32 %v1047, %v1057
    %v1060 = vadd.f32 %v1048, %v1057
    %v1061 = vadd.f32 %v1049, %v1057
    %v1062 = vadd.f32 %v1050, %v1057
    %v1063 = vmax.f32 %v1059, 0.0
    %v1064 = vmax.f32 %v1060, 0.0
    %v1065 = vmax.f32 %v1061, 0.0
    %v1066 = vmax.f32 %v1062, 0.0
    %v1067 = vadd.f32 %v1063, %v703
    %v1068 = vadd.f32 %v1064, %v704
    %v1069 = vadd.f32 %v1065, %v705
    %v1070 = vadd.f32 %v1066, %v706
    %v1071 = vpack.c.bf16 %v1068, %v1067
    %v1072 = vpack.c.bf16 %v1070, %v1069
    %v1073 = vld [vmem:[%s6] sm:$0xf]
    %v1074 = vld [vmem:[%s6 + $0x4] sm:$0xf]
    %v1075 = vld [vmem:[%s6 + $0x8] sm:$0xf]
    %v1076 = vld [vmem:[%s6 + $0xc] sm:$0xf]
    %v1077 = vld [vmem:[%s7] sm:$0x1]
    %v1079 = vlaneseq
    %v1080 = vshrl.u32 %v1079, 7
    %v1081 = vsub.s32 0, %v1080
    %v1082 = vrot.slane %v1077, %v1081
    %v1088 = vunpack.c.l.b16 %v1073
    %v1089 = vunpack.c.l.b16 %v1074
    %v1090 = vunpack.c.l.b16 %v1075
    %v1091 = vunpack.c.l.b16 %v1076
    %v1092 = vpack.c.b16 %v1089, %v1088
    %v1093 = vpack.c.b16 %v1091, %v1090
    %v1097 = vsel %vm57, %v1071, 0
    %v1100 = vsel %vm57, %v1072, 0
    %1102 = vmatprep.subr.bf16.mxu0 0
    %1103 = vmatpush1.bf16.msra.mxu0 0
    %1104 = vmatprep.subr.bf16.mxu0 0
    %1105 = vmatpush1.bf16.msra.mxu0 0
    %1106 = vmatprep.subr.bf16.mxu0 0
    %1107 = vmatpush1.bf16.msra.mxu0 0
    %1108 = vmatprep.subr.bf16.mxu0 0
    %1109 = vmatpush1.bf16.msra.mxu0 0
    %1110 = vmatprep.subr.bf16.mxu0 0
    %1111 = vmatpush1.bf16.msra.mxu0 0
    %1112 = vmatprep.subr.bf16.mxu0 0
    %1113 = vmatpush1.bf16.msra.mxu0 0
    %1114 = vmatprep.subr.bf16.mxu0 0
    %1115 = vmatpush1.bf16.msra.mxu0 %v1093
    %1116 = vmatprep.subr.bf16.mxu0 0
    %1117 = vmatpush1.bf16.msra.mxu0 %v1092
    %1118 = vmatprep.subr.bf16.mxu0 0
    %1119 = vmatpush2.bf16.msra.mxu0 0
    %1120 = vmatprep.subr.bf16.mxu0 0
    %1121 = vmatpush2.bf16.msra.mxu0 0
    %1122 = vmatprep.subr.bf16.mxu0 0
    %1123 = vmatpush2.bf16.msra.mxu0 0
    %1124 = vmatprep.subr.bf16.mxu0 0
    %1125 = vmatpush2.bf16.msra.mxu0 0
    %1126 = vmatprep.subr.bf16.mxu0 0
    %1127 = vmatpush2.bf16.msra.mxu0 0
    %1128 = vmatprep.subr.bf16.mxu0 0
    %1129 = vmatpush2.bf16.msra.mxu0 0
    %1130 = vmatprep.subr.bf16.mxu0 0
    %1131 = vmatpush2.bf16.msra.mxu0 0
    %1132 = vmatprep.subr.bf16.mxu0 0
    %1133 = vmatpush2.bf16.msra.mxu0 0
    %1134 = vmatprep.mubr.bf16.mxu0 0
    %1135 = vmatmul.mubr.bf16.gmra.mxu0 %v1097
    %v1136 = vpop.f32.mrf.mxu0
    %v1137 = vadd.f32 %v1082, %v1136
    %v1138 = vpop.f32.mrf.mxu0
    %v1139 = vpop.f32.mrf.mxu0
    %v1140 = vadd.f32 %v1082, %v1139
    %v1141 = vpop.f32.mrf.mxu0
    %1142 = vmatprep.mubr.bf16.mxu0 0
    %1143 = vmatmul.mubr.bf16.gmra.mxu0 %v1100
    %v1144 = vpop.f32.mrf.mxu0
    %v1145 = vadd.f32 %v1082, %v1144
    %v1146 = vpop.f32.mrf.mxu0
    %v1147 = vpop.f32.mrf.mxu0
    %v1148 = vadd.f32 %v1082, %v1147
    %v1149 = vpop.f32.mrf.mxu0
    %1150 = vdwg.mxu0
    %vm1151 = vcmask 130048
    %1152 = vst.msk [vmem:[#allocation2] sm:$0xff] %vm1151, %v1137
    %1153 = vst.msk [vmem:[#allocation2 + $0x8] sm:$0xff] %vm1151, %v1140
    %1154 = vst.msk [vmem:[#allocation2 + $0x10] sm:$0xff] %vm1151, %v1145
    %1155 = vst.msk [vmem:[#allocation2 + $0x18] sm:$0xff] %vm1151, %v1148
    // Predicated region
    $region34: #{tpu_custom_call.1} parent=1 // pred_check
      _
    $region35: #{tpu_custom_call.1} parent=1 // pred_check_branch
      %1157 = sbr.rel (0) target = $region37
    $region36: #{tpu_custom_call.1} parent=1 // pred_region
      %s1159 = ssub.s32 512, 512
      %1160 = vsyncadd [#allocation3], %s1159
      %s1161 = sshll.u32 [#allocation2], 4
      %s1162 = int_to_ptr.vmem [resolvable:$true] %s1161
      %1167 = dma.vmem_to_hbm [thread:$0]  %s1162, 512, %s8, [#allocation3], 128, 128, 8
    $region37: #{tpu_custom_call.1} parent=1 // pred_fallthru
      _
    // Predicated region
    $region38: #{tpu_custom_call.1} parent=1 // pred_check
      _
    $region39: #{tpu_custom_call.1} parent=1 // pred_check_branch
      %1169 = sbr.rel (0) target = $region41
    $region40: #{tpu_custom_call.1} parent=1 // pred_region
      %1170 = dma.done [#allocation3], 512
    $region41: #{tpu_custom_call.1} parent=1 // pred_fallthru
      _
    %1171 = vsyncpa [#allocation3], 1

</llo_original>
